<compile_context>
chip_gen: v7x
topology: tpu7x:2x2x1
jax: 0.10.0
libtpu: 0.0.40
codegen_flags: <defaults>
</compile_context>

<pallas_src>
import jax
import jax.numpy as jnp
from jax import lax
from jax.experimental import pallas as pl
from jax.experimental.pallas import tpu as pltpu


def _round_up(x, m):
    return (x + m - 1) // m * m


def _softplus_sigmoid(a):
    """Fused, numerically stable softplus(a) and softplus'(a) == sigmoid(a).

    One exp + one log1p per layer serves both forward and backward, instead of
    separate exp calls for softplus and sigmoid (EUP has a single VLIW slot)."""
    e = jnp.exp(-jnp.abs(a))
    sp = jnp.maximum(a, 0.0) + jnp.log1p(e)
    sg = jnp.where(a >= 0, 1.0, e) / (1.0 + e)
    return sp, sg


# ----------------------------------------------------------------------------- kernel
def clnn_dynamics_kernel(
    x_ref,
    w1_ref, b1_ref, w2_ref, b2_ref, w3_ref, b3_ref,
    w4row_ref, b4_ref,
    w1t_minv_ref,
    V_out_ref, vdot_ref,
):
    x = x_ref[...]                                   # (blk, n*d), f32
    mm_dtype = w1_ref.dtype                          # f32 (or bf16 on v6e/v7x)

    # ---- potential V(x): MLP [n*d -> H -> H -> H -> 1], Softplus activations ----
    a1 = jnp.dot(x.astype(mm_dtype), w1_ref[...],
                 preferred_element_type=jnp.float32) + b1_ref[...]
    h1, s1 = _softplus_sigmoid(a1)
    a2 = jnp.dot(h1.astype(mm_dtype), w2_ref[...],
                 preferred_element_type=jnp.float32) + b2_ref[...]
    h2, s2 = _softplus_sigmoid(a2)
    a3 = jnp.dot(h2.astype(mm_dtype), w3_ref[...],
                 preferred_element_type=jnp.float32) + b3_ref[...]
    h3, s3 = _softplus_sigmoid(a3)

    # N=1 head: VPU multiply + lane reduce instead of a 1-lane MXU matmul.
    w4row = w4row_ref[...]                           # (1, H) f32
    V = jnp.sum(h3 * w4row, axis=-1, keepdims=True) + b4_ref[...]   # (blk, 1)
    V_out_ref[...] = V

    # ---- dV/dx via hand-written backward pass (softplus' = sigmoid) ----
    # W2/W3 are consumed directly as the transposed operand of the contraction,
    # so no W.T copies are shipped to the kernel.
    trans_dims = (((1,), (1,)), ((), ()))
    ga3 = w4row * s3                                                 # (blk, H)
    g2 = lax.dot_general(ga3.astype(mm_dtype), w3_ref[...],
                         dimension_numbers=trans_dims,
                         preferred_element_type=jnp.float32)
    ga2 = g2 * s2
    g1 = lax.dot_general(ga2.astype(mm_dtype), w2_ref[...],
                         dimension_numbers=trans_dims,
                         preferred_element_type=jnp.float32)
    ga1 = g1 * s1

    # vdot = Minv_op(-dV): Minv and the negation are folded into W1t_minv in the wrapper,
    # so this is a single matmul  ga1 @ (-(W1.T @ Minv_flat.T)).
    vdot_ref[...] = jnp.dot(ga1.astype(mm_dtype), w1t_minv_ref[...],
                            preferred_element_type=jnp.float32)


# ----------------------------------------------------------------------------- wrapper
def clnnwc_forward(params, t, z, n, d, *, block_bs=512, matmul_dtype=jnp.float32):
    """z: (bs, 2*n*d). Returns (dz/dt (bs, 2*n*d), V(x) (bs,)).

    block_bs: batch tile (rows per grid step). Default 512 keeps VMEM usage well under
    the v7x 64 MiB budget even at hidden_size=256 while hitting HBM-roofline tiles.
    matmul_dtype: pass jnp.bfloat16 on v6e/v7x for the MXU path (f32 accumulation kept).
    """
    del t  # autonomous system: t is unused by the dynamics
    bs = z.shape[0]
    nd = n * d
    x = z[:, :nd]
    v = z[:, nd:]
    (W1, b1), (W2, b2), (W3, b3), (W4, b4) = params["V_net"]
    hidden = W1.shape[1]

    # Fold Minv_op and the negation into W1.T: vdot = ga1 @ W1t_minv.
    w1t_minv = -(W1.T @ params["Minv_flat"].T)       # (H, n*d)
    w4row = W4.T                                      # (1, H), stays f32 (VPU path)

    # Batch tiling: pad bs to a multiple of the tile; tile is a multiple of 8 sublanes.
    blk = max(8, min(block_bs, _round_up(bs, 8)))
    bs_pad = _round_up(bs, blk)
    if bs_pad != bs:
        x = jnp.pad(x, ((0, bs_pad - bs), (0, 0)))

    cast = lambda a: a.astype(matmul_dtype)
    ins = [x,
           cast(W1), b1, cast(W2), b2, cast(W3), b3,
           w4row, b4,
           cast(w1t_minv)]

    def resident(shape):
        # Weights: same block index every grid step -> stay resident in VMEM, no re-DMA.
        return pl.BlockSpec(shape, lambda i: (0, 0))

    in_specs = [
        pl.BlockSpec((blk, nd), lambda i: (i, 0)),    # x: tiled over batch
        resident((nd, hidden)), resident((1, hidden)),
        resident((hidden, hidden)), resident((1, hidden)),
        resident((hidden, hidden)), resident((1, hidden)),
        resident((1, hidden)), resident((1, 1)),
        resident((hidden, nd)),
    ]
    out_shape = (jax.ShapeDtypeStruct((bs_pad, 1), jnp.float32),
                 jax.ShapeDtypeStruct((bs_pad, nd), jnp.float32))
    out_specs = (pl.BlockSpec((blk, 1), lambda i: (i, 0)),
                 pl.BlockSpec((blk, nd), lambda i: (i, 0)))

    V, vdot = pl.pallas_call(
        clnn_dynamics_kernel,
        grid=(bs_pad // blk,),
        in_specs=in_specs,
        out_specs=out_specs,
        out_shape=out_shape,
        compiler_params=pltpu.CompilerParams(
            dimension_semantics=("parallel",)),       # shards the batch grid across TCs on v7x
    )(*ins)

    V = V[:bs, 0]                                     # Reshape(-1) on V_net output
    vdot = vdot[:bs]
    # v never goes through the kernel; XLA fuses this concat with the surrounding ops.
    dzdt = jnp.concatenate([v, vdot], axis=1)
    return dzdt, V


# ----------------------------------------------------------------------------- params
def build_minv_flat(m_params, d_key, d):
    """Dense matrix realizing Minv_op on the flattened (n*d,) coordinate vector."""
    inv_moments = jnp.exp(-m_params)          # (n_o, d_key+1)
    inv_masses = inv_moments[:, :1]           # (n_o, 1)
    if d_key == 0:
        minv_nodes = jnp.diag(inv_masses[:, 0])
    else:
        n_p = d_key + 1
        padded = jnp.concatenate([jnp.zeros_like(inv_masses), inv_moments[:, 1:]], axis=-1)
        blocks = inv_masses[:, :, None] * jnp.ones((1, n_p, n_p), m_params.dtype) \
                 + jax.vmap(jnp.diag)(padded)                              # (n_o, n_p, n_p)
        minv_nodes = jax.scipy.linalg.block_diag(*[blocks[i] for i in range(blocks.shape[0])])
    return jnp.kron(minv_nodes, jnp.eye(d, dtype=m_params.dtype))          # (n*d, n*d)


def init_params(key, n, d, d_key, n_c, hidden_size=32, num_layers=3):
    n_p = d_key + 1
    n_o = n // n_p
    keys = jax.random.split(key, num_layers + 4)
    sizes = [n * d] + num_layers * [hidden_size] + [1]
    orth = jax.nn.initializers.orthogonal()
    vnet = []
    for i, (fin, fout) in enumerate(zip(sizes[:-1], sizes[1:])):
        w_torch = orth(keys[i], (fout, fin), jnp.float32)   # torch Linear weight layout (out, in)
        vnet.append((w_torch.T, jnp.zeros((1, fout), jnp.float32)))
    m_params = 0.1 * jax.random.normal(keys[num_layers + 1], (n_o, n_p), jnp.float32)
    params = {
        "V_net": vnet,
        "m_params": m_params,
        "Minv_flat": build_minv_flat(m_params, d_key, d),
        # mu/cor parameters exist on the module but are only used in integrate(), not forward():
        "mu_params": jax.random.uniform(keys[num_layers + 2], (n_c,), jnp.float32),
        "cor_params": jax.random.normal(keys[num_layers + 3], (n_c,), jnp.float32),
    }
    return params


# ----------------------------------------------------------------------------- reference
def _softplus_ref(x):
    return jnp.maximum(x, 0.0) + jnp.log1p(jnp.exp(-jnp.abs(x)))


def _potential_ref(vnet, x_flat):
    (W1, b1), (W2, b2), (W3, b3), (W4, b4) = vnet
    h = _softplus_ref(x_flat @ W1 + b1)
    h = _softplus_ref(h @ W2 + b2)
    h = _softplus_ref(h @ W3 + b3)
    return (h @ W4 + b4)[:, 0]


def forward_ref(params, z, n, d):
    nd = n * d
    x, v = z[:, :nd], z[:, nd:]
    dV = jax.grad(lambda xf: _potential_ref(params["V_net"], xf).sum())(x)
    vdot = (-dV) @ params["Minv_flat"].T
    return jnp.concatenate([v, vdot], axis=1), _potential_ref(params["V_net"], x)


# ----------------------------------------------------------------------------- main
if __name__ == "__main__":
    # small configuration: 2 rigid bodies (d_key=1 -> 2 extended points each), 2-D space
    n, d = 4, 2
    d_key = 1
    n_c = 2
    hidden = 32
    bs = 20           # not a multiple of the tile -> exercises batch padding
    test_block_bs = 8  # small tile so the batch grid has >1 step in this tiny test

    key = jax.random.PRNGKey(0)
    pkey, zkey = jax.random.split(key)
    params = init_params(pkey, n, d, d_key, n_c, hidden_size=hidden, num_layers=3)

    z = jax.random.normal(zkey, (bs, 2 * n * d), jnp.float32)
    t = jnp.zeros(())

    dzdt, V = clnnwc_forward(params, t, z, n, d, block_bs=test_block_bs)
    jax.block_until_ready((dzdt, V))

    dzdt_ref, V_ref = forward_ref(params, z, n, d)
    assert dzdt.shape == (bs, 2 * n * d) and V.shape == (bs,)
    assert jnp.allclose(dzdt, dzdt_ref, atol=1e-4, rtol=1e-4)
    assert jnp.allclose(V, V_ref, atol=1e-4, rtol=1e-4)

    print("KERNEL_OK")
</pallas_src>

<mosaic_0001>
module attributes {stable_mosaic.version = 11 : i64} {
  func.func @clnn_dynamics_kernel(%arg0: i32, %arg1: memref<8x8xf32, #tpu.memory_space<vmem>>, %arg2: memref<8x32xf32, #tpu.memory_space<vmem>>, %arg3: memref<1x32xf32, #tpu.memory_space<vmem>>, %arg4: memref<32x32xf32, #tpu.memory_space<vmem>>, %arg5: memref<1x32xf32, #tpu.memory_space<vmem>>, %arg6: memref<32x32xf32, #tpu.memory_space<vmem>>, %arg7: memref<1x32xf32, #tpu.memory_space<vmem>>, %arg8: memref<1x32xf32, #tpu.memory_space<vmem>>, %arg9: memref<1x1xf32, #tpu.memory_space<vmem>>, %arg10: memref<32x8xf32, #tpu.memory_space<vmem>>, %arg11: memref<8x1xf32, #tpu.memory_space<vmem>>, %arg12: memref<8x8xf32, #tpu.memory_space<vmem>>) attributes {dimension_semantics = [#tpu.dimension_semantics<parallel>], iteration_bounds = array<i64: 3>, scalar_prefetch = 0 : i64, scratch_operands = 0 : i64, tpu.core_type = #tpu.core_type<tc>, window_params = [{transform_indices = @transform_0, window_bounds = array<i64: 8, 8>}, {pipeline_mode = #tpu.pipeline_mode<synchronous>, transform_indices = @transform_1, window_bounds = array<i64: 8, 32>}, {pipeline_mode = #tpu.pipeline_mode<synchronous>, transform_indices = @transform_2, window_bounds = array<i64: 1, 32>}, {pipeline_mode = #tpu.pipeline_mode<synchronous>, transform_indices = @transform_3, window_bounds = array<i64: 32, 32>}, {pipeline_mode = #tpu.pipeline_mode<synchronous>, transform_indices = @transform_4, window_bounds = array<i64: 1, 32>}, {pipeline_mode = #tpu.pipeline_mode<synchronous>, transform_indices = @transform_5, window_bounds = array<i64: 32, 32>}, {pipeline_mode = #tpu.pipeline_mode<synchronous>, transform_indices = @transform_6, window_bounds = array<i64: 1, 32>}, {pipeline_mode = #tpu.pipeline_mode<synchronous>, transform_indices = @transform_7, window_bounds = array<i64: 1, 32>}, {pipeline_mode = #tpu.pipeline_mode<synchronous>, transform_indices = @transform_8, window_bounds = array<i64: 1, 1>}, {pipeline_mode = #tpu.pipeline_mode<synchronous>, transform_indices = @transform_9, window_bounds = array<i64: 32, 8>}, {transform_indices = @transform_10, window_bounds = array<i64: 8, 1>}, {transform_indices = @transform_11, window_bounds = array<i64: 8, 8>}]} {
    %c0 = arith.constant 0 : index
    %c0_0 = arith.constant 0 : index
    %0 = vector.load %arg1[%c0, %c0_0] : memref<8x8xf32, #tpu.memory_space<vmem>>, vector<8x8xf32>
    %c0_1 = arith.constant 0 : index
    %c0_2 = arith.constant 0 : index
    %1 = vector.load %arg2[%c0_1, %c0_2] : memref<8x32xf32, #tpu.memory_space<vmem>>, vector<8x32xf32>
    %cst = arith.constant dense<0.000000e+00> : vector<8x32xf32>
    %2 = tpu.matmul %0, %1, %cst {dimension_numbers = #tpu.dot_dimension_numbers<[1], [0], [0], [1], [0, 0, 1, 1], [], []>} : vector<8x8xf32>, vector<8x32xf32>, vector<8x32xf32> -> vector<8x32xf32>
    %c0_3 = arith.constant 0 : index
    %c0_4 = arith.constant 0 : index
    %3 = vector.load %arg3[%c0_3, %c0_4] : memref<1x32xf32, #tpu.memory_space<vmem>>, vector<1x32xf32>
    %4 = vector.broadcast %3 : vector<1x32xf32> to vector<8x32xf32>
    %5 = arith.addf %2, %4 : vector<8x32xf32>
    %6 = math.absf %5 : vector<8x32xf32>
    %cst_5 = arith.constant 0.000000e+00 : f32
    %7 = vector.broadcast %cst_5 : f32 to vector<8x32xf32>
    %8 = arith.subf %7, %6 : vector<8x32xf32>
    %9 = math.exp %8 : vector<8x32xf32>
    %cst_6 = arith.constant 0.000000e+00 : f32
    %10 = vector.broadcast %cst_6 : f32 to vector<8x32xf32>
    %11 = arith.maximumf %5, %10 : vector<8x32xf32>
    %12 = math.log1p %9 : vector<8x32xf32>
    %13 = arith.addf %11, %12 : vector<8x32xf32>
    %cst_7 = arith.constant 0.000000e+00 : f32
    %14 = vector.broadcast %cst_7 : f32 to vector<8x32xf32>
    %15 = arith.cmpf oge, %5, %14 : vector<8x32xf32>
    %cst_8 = arith.constant 1.000000e+00 : f32
    %16 = vector.broadcast %cst_8 : f32 to vector<8x32xf32>
    %17 = arith.select %15, %16, %9 : vector<8x32xi1>, vector<8x32xf32>
    %cst_9 = arith.constant 1.000000e+00 : f32
    %18 = vector.broadcast %cst_9 : f32 to vector<8x32xf32>
    %19 = arith.addf %18, %9 : vector<8x32xf32>
    %20 = arith.divf %17, %19 : vector<8x32xf32>
    %c0_10 = arith.constant 0 : index
    %c0_11 = arith.constant 0 : index
    %21 = vector.load %arg4[%c0_10, %c0_11] : memref<32x32xf32, #tpu.memory_space<vmem>>, vector<32x32xf32>
    %cst_12 = arith.constant dense<0.000000e+00> : vector<8x32xf32>
    %22 = tpu.matmul %13, %21, %cst_12 {dimension_numbers = #tpu.dot_dimension_numbers<[1], [0], [0], [1], [0, 0, 1, 1], [], []>} : vector<8x32xf32>, vector<32x32xf32>, vector<8x32xf32> -> vector<8x32xf32>
    %c0_13 = arith.constant 0 : index
    %c0_14 = arith.constant 0 : index
    %23 = vector.load %arg5[%c0_13, %c0_14] : memref<1x32xf32, #tpu.memory_space<vmem>>, vector<1x32xf32>
    %24 = vector.broadcast %23 : vector<1x32xf32> to vector<8x32xf32>
    %25 = arith.addf %22, %24 : vector<8x32xf32>
    %26 = math.absf %25 : vector<8x32xf32>
    %cst_15 = arith.constant 0.000000e+00 : f32
    %27 = vector.broadcast %cst_15 : f32 to vector<8x32xf32>
    %28 = arith.subf %27, %26 : vector<8x32xf32>
    %29 = math.exp %28 : vector<8x32xf32>
    %cst_16 = arith.constant 0.000000e+00 : f32
    %30 = vector.broadcast %cst_16 : f32 to vector<8x32xf32>
    %31 = arith.maximumf %25, %30 : vector<8x32xf32>
    %32 = math.log1p %29 : vector<8x32xf32>
    %33 = arith.addf %31, %32 : vector<8x32xf32>
    %cst_17 = arith.constant 0.000000e+00 : f32
    %34 = vector.broadcast %cst_17 : f32 to vector<8x32xf32>
    %35 = arith.cmpf oge, %25, %34 : vector<8x32xf32>
    %cst_18 = arith.constant 1.000000e+00 : f32
    %36 = vector.broadcast %cst_18 : f32 to vector<8x32xf32>
    %37 = arith.select %35, %36, %29 : vector<8x32xi1>, vector<8x32xf32>
    %cst_19 = arith.constant 1.000000e+00 : f32
    %38 = vector.broadcast %cst_19 : f32 to vector<8x32xf32>
    %39 = arith.addf %38, %29 : vector<8x32xf32>
    %40 = arith.divf %37, %39 : vector<8x32xf32>
    %c0_20 = arith.constant 0 : index
    %c0_21 = arith.constant 0 : index
    %41 = vector.load %arg6[%c0_20, %c0_21] : memref<32x32xf32, #tpu.memory_space<vmem>>, vector<32x32xf32>
    %cst_22 = arith.constant dense<0.000000e+00> : vector<8x32xf32>
    %42 = tpu.matmul %33, %41, %cst_22 {dimension_numbers = #tpu.dot_dimension_numbers<[1], [0], [0], [1], [0, 0, 1, 1], [], []>} : vector<8x32xf32>, vector<32x32xf32>, vector<8x32xf32> -> vector<8x32xf32>
    %c0_23 = arith.constant 0 : index
    %c0_24 = arith.constant 0 : index
    %43 = vector.load %arg7[%c0_23, %c0_24] : memref<1x32xf32, #tpu.memory_space<vmem>>, vector<1x32xf32>
    %44 = vector.broadcast %43 : vector<1x32xf32> to vector<8x32xf32>
    %45 = arith.addf %42, %44 : vector<8x32xf32>
    %46 = math.absf %45 : vector<8x32xf32>
    %cst_25 = arith.constant 0.000000e+00 : f32
    %47 = vector.broadcast %cst_25 : f32 to vector<8x32xf32>
    %48 = arith.subf %47, %46 : vector<8x32xf32>
    %49 = math.exp %48 : vector<8x32xf32>
    %cst_26 = arith.constant 0.000000e+00 : f32
    %50 = vector.broadcast %cst_26 : f32 to vector<8x32xf32>
    %51 = arith.maximumf %45, %50 : vector<8x32xf32>
    %52 = math.log1p %49 : vector<8x32xf32>
    %53 = arith.addf %51, %52 : vector<8x32xf32>
    %cst_27 = arith.constant 0.000000e+00 : f32
    %54 = vector.broadcast %cst_27 : f32 to vector<8x32xf32>
    %55 = arith.cmpf oge, %45, %54 : vector<8x32xf32>
    %cst_28 = arith.constant 1.000000e+00 : f32
    %56 = vector.broadcast %cst_28 : f32 to vector<8x32xf32>
    %57 = arith.select %55, %56, %49 : vector<8x32xi1>, vector<8x32xf32>
    %cst_29 = arith.constant 1.000000e+00 : f32
    %58 = vector.broadcast %cst_29 : f32 to vector<8x32xf32>
    %59 = arith.addf %58, %49 : vector<8x32xf32>
    %60 = arith.divf %57, %59 : vector<8x32xf32>
    %c0_30 = arith.constant 0 : index
    %c0_31 = arith.constant 0 : index
    %61 = vector.load %arg8[%c0_30, %c0_31] : memref<1x32xf32, #tpu.memory_space<vmem>>, vector<1x32xf32>
    %62 = vector.broadcast %61 : vector<1x32xf32> to vector<8x32xf32>
    %63 = arith.mulf %53, %62 : vector<8x32xf32>
    %cst_32 = arith.constant dense<0.000000e+00> : vector<8xf32>
    %64 = vector.multi_reduction <add>, %63, %cst_32 [1] : vector<8x32xf32> to vector<8xf32>
    %65 = vector.shape_cast %64 : vector<8xf32> to vector<8x1xf32>
    %c0_33 = arith.constant 0 : index
    %c0_34 = arith.constant 0 : index
    %66 = vector.load %arg9[%c0_33, %c0_34] : memref<1x1xf32, #tpu.memory_space<vmem>>, vector<1x1xf32>
    %67 = vector.broadcast %66 : vector<1x1xf32> to vector<8x1xf32>
    %68 = arith.addf %65, %67 : vector<8x1xf32>
    %c0_35 = arith.constant 0 : index
    %c0_36 = arith.constant 0 : index
    %69 = vector.load %arg11[%c0_35, %c0_36] : memref<8x1xf32, #tpu.memory_space<vmem>>, vector<8x1xf32>
    tpu.vector_store %arg11[%c0_35, %c0_36], %68 {strides = array<i32>} : memref<8x1xf32, #tpu.memory_space<vmem>>, vector<8x1xf32>,
    %70 = vector.broadcast %61 : vector<1x32xf32> to vector<8x32xf32>
    %71 = arith.mulf %70, %60 : vector<8x32xf32>
    %c0_37 = arith.constant 0 : index
    %c0_38 = arith.constant 0 : index
    %72 = vector.load %arg6[%c0_37, %c0_38] : memref<32x32xf32, #tpu.memory_space<vmem>>, vector<32x32xf32>
    %cst_39 = arith.constant dense<0.000000e+00> : vector<8x32xf32>
    %73 = tpu.matmul %71, %72, %cst_39 {dimension_numbers = #tpu.dot_dimension_numbers<[1], [1], [0], [0], [0, 0, 1, 0], [], []>} : vector<8x32xf32>, vector<32x32xf32>, vector<8x32xf32> -> vector<8x32xf32>
    %74 = arith.mulf %73, %40 : vector<8x32xf32>
    %c0_40 = arith.constant 0 : index
    %c0_41 = arith.constant 0 : index
    %75 = vector.load %arg4[%c0_40, %c0_41] : memref<32x32xf32, #tpu.memory_space<vmem>>, vector<32x32xf32>
    %cst_42 = arith.constant dense<0.000000e+00> : vector<8x32xf32>
    %76 = tpu.matmul %74, %75, %cst_42 {dimension_numbers = #tpu.dot_dimension_numbers<[1], [1], [0], [0], [0, 0, 1, 0], [], []>} : vector<8x32xf32>, vector<32x32xf32>, vector<8x32xf32> -> vector<8x32xf32>
    %77 = arith.mulf %76, %20 : vector<8x32xf32>
    %c0_43 = arith.constant 0 : index
    %c0_44 = arith.constant 0 : index
    %78 = vector.load %arg10[%c0_43, %c0_44] : memref<32x8xf32, #tpu.memory_space<vmem>>, vector<32x8xf32>
    %cst_45 = arith.constant dense<0.000000e+00> : vector<8x8xf32>
    %79 = tpu.matmul %77, %78, %cst_45 {dimension_numbers = #tpu.dot_dimension_numbers<[1], [0], [0], [1], [0, 0, 1, 1], [], []>} : vector<8x32xf32>, vector<32x8xf32>, vector<8x8xf32> -> vector<8x8xf32>
    %c0_46 = arith.constant 0 : index
    %c0_47 = arith.constant 0 : index
    %80 = vector.load %arg12[%c0_46, %c0_47] : memref<8x8xf32, #tpu.memory_space<vmem>>, vector<8x8xf32>
    tpu.vector_store %arg12[%c0_46, %c0_47], %79 {strides = array<i32>} : memref<8x8xf32, #tpu.memory_space<vmem>>, vector<8x8xf32>,
    return
  }
  func.func @transform_0(%arg0: i32) -> (i32, i32) {
    %c0_i32 = arith.constant 0 : i32
    %c0_i32_0 = arith.constant 0 : i32
    return %arg0, %c0_i32 : i32, i32
  }
  func.func @transform_1(%arg0: i32) -> (i32, i32) {
    %c0_i32 = arith.constant 0 : i32
    %c0_i32_0 = arith.constant 0 : i32
    %c0_i32_1 = arith.constant 0 : i32
    return %c0_i32, %c0_i32_0 : i32, i32
  }
  func.func @transform_2(%arg0: i32) -> (i32, i32) {
    %c0_i32 = arith.constant 0 : i32
    %c0_i32_0 = arith.constant 0 : i32
    %c0_i32_1 = arith.constant 0 : i32
    return %c0_i32, %c0_i32_0 : i32, i32
  }
  func.func @transform_3(%arg0: i32) -> (i32, i32) {
    %c0_i32 = arith.constant 0 : i32
    %c0_i32_0 = arith.constant 0 : i32
    %c0_i32_1 = arith.constant 0 : i32
    return %c0_i32, %c0_i32_0 : i32, i32
  }
  func.func @transform_4(%arg0: i32) -> (i32, i32) {
    %c0_i32 = arith.constant 0 : i32
    %c0_i32_0 = arith.constant 0 : i32
    %c0_i32_1 = arith.constant 0 : i32
    return %c0_i32, %c0_i32_0 : i32, i32
  }
  func.func @transform_5(%arg0: i32) -> (i32, i32) {
    %c0_i32 = arith.constant 0 : i32
    %c0_i32_0 = arith.constant 0 : i32
    %c0_i32_1 = arith.constant 0 : i32
    return %c0_i32, %c0_i32_0 : i32, i32
  }
  func.func @transform_6(%arg0: i32) -> (i32, i32) {
    %c0_i32 = arith.constant 0 : i32
    %c0_i32_0 = arith.constant 0 : i32
    %c0_i32_1 = arith.constant 0 : i32
    return %c0_i32, %c0_i32_0 : i32, i32
  }
  func.func @transform_7(%arg0: i32) -> (i32, i32) {
    %c0_i32 = arith.constant 0 : i32
    %c0_i32_0 = arith.constant 0 : i32
    %c0_i32_1 = arith.constant 0 : i32
    return %c0_i32, %c0_i32_0 : i32, i32
  }
  func.func @transform_8(%arg0: i32) -> (i32, i32) {
    %c0_i32 = arith.constant 0 : i32
    %c0_i32_0 = arith.constant 0 : i32
    %c0_i32_1 = arith.constant 0 : i32
    return %c0_i32, %c0_i32_0 : i32, i32
  }
  func.func @transform_9(%arg0: i32) -> (i32, i32) {
    %c0_i32 = arith.constant 0 : i32
    %c0_i32_0 = arith.constant 0 : i32
    %c0_i32_1 = arith.constant 0 : i32
    return %c0_i32, %c0_i32_0 : i32, i32
  }
  func.func @transform_10(%arg0: i32) -> (i32, i32) {
    %c0_i32 = arith.constant 0 : i32
    %c0_i32_0 = arith.constant 0 : i32
    return %arg0, %c0_i32 : i32, i32
  }
  func.func @transform_11(%arg0: i32) -> (i32, i32) {
    %c0_i32 = arith.constant 0 : i32
    %c0_i32_0 = arith.constant 0 : i32
    return %arg0, %c0_i32 : i32, i32
  }
}

</mosaic_0001>

<llo_original>
// kernel: tpu_custom_call.1
$region0: #{tpu_custom_call.1}
  #allocation0 [shape = 'u32[]', space=smem, size = 0x4, offset = 0x4, fixed_abs, tag = 'smem constant byte address 0x4 - core index']
  #allocation1 [shape = 'u32[144,128]{1,0:T(1,128)}', space=vmem, size = 0x12000, scoped, tag = 'internal scratch']
  #allocation2 [shape = 'f32[1,1]{1,0:T(1,128)S(1)}', space=vmem, size = 0x200, scoped, tag = 'scoped memory for tpu_custom_call.1']
  %s0 = inlined_call_operand.vmem [shape: f32[24,8], index: 0, kind: input, shape index: {}]
  %s1 = inlined_call_operand.hbm [shape: f32[8,32], index: 1, kind: input, shape index: {}]
  %s2 = inlined_call_operand.vmem [shape: f32[1,32], index: 2, kind: input, shape index: {}]
  %s3 = inlined_call_operand.vmem [shape: f32[32,32], index: 3, kind: input, shape index: {}]
  %s4 = inlined_call_operand.vmem [shape: f32[1,32], index: 4, kind: input, shape index: {}]
  %s5 = inlined_call_operand.vmem [shape: f32[32,32], index: 5, kind: input, shape index: {}]
  %s6 = inlined_call_operand.vmem [shape: f32[1,32], index: 6, kind: input, shape index: {}]
  %s7 = inlined_call_operand.vmem [shape: f32[1,32], index: 7, kind: input, shape index: {}]
  %s8 = inlined_call_operand.<no memory space> [shape: f32[1,1], index: 8, kind: input, shape index: {}]
  %s9 = inlined_call_operand.vmem [shape: f32[32,8], index: 9, kind: input, shape index: {}]
  %s10 = inlined_call_operand.vmem [shape: f32[24,1], index: 10, kind: output, shape index: {0}]
  %s11 = inlined_call_operand.vmem [shape: f32[24,8], index: 11, kind: output, shape index: {1}]
  %12 = xla_tuple %s10, %s11
  %s13 = sld [smem:[#allocation0]]
  $region85: #{tpu_custom_call.1} parent=0
    _
  %s15 = ssub.s32 1, %s13
  %s16 = scalar_select 0, %s15, %s13
  %v17 = vstv %s8
  %18 = vst [vmem:[#allocation2] sm:$0x1] %v17
  $region1: #{tpu_custom_call.1} parent=0
    #allocation3 [shape = 'u8[4096]{0}', space=vmem, size = 0x1000, scoped, tag = 'input window, operand 1, single buffered']
    #allocation4 [shape = 's32[2]{0}', space=sflag, size = 0x8, scoped, tag = 'scoped memory for tpu_custom_call.1']
    %19 = vsyncpa [#allocation4], 0
    loop: start=0, step=1, limit=5
    $region2: #{tpu_custom_call.1} parent=1 // loop_pre_header
      _
    $region3: #{tpu_custom_call.1} parent=1 // loop_header
      %s21 = sphi 0, %s25
      %p22 = scmp.ge.s32.totalorder %s21, 5
      %s31 = sphi 0, %s33
      %s34 = sphi 0, %s31
      %s35 = sphi 0, %s34
      %s51 = sphi 0, %s35
      %s55 = sphi 0, %s55
      %s57 = sphi 0, %s55
      %s58 = sphi 0, %s57
      %s72 = sphi 0, %s58
      %s76 = sphi 0, %s76
      %s78 = sphi 0, %s76
      %s79 = sphi 0, %s78
      %s93 = sphi 0, %s79
      %s97 = sphi 0, %s97
      %s99 = sphi 0, %s97
      %s100 = sphi 0, %s99
      %s114 = sphi 0, %s100
      %s118 = sphi 0, %s118
      %s120 = sphi 0, %s118
      %s121 = sphi 0, %s120
      %s135 = sphi 0, %s121
      %s139 = sphi 0, %s139
      %s141 = sphi 0, %s139
      %s142 = sphi 0, %s141
      %s156 = sphi 0, %s142
      %s160 = sphi 0, %s160
      %s162 = sphi 0, %s160
      %s163 = sphi 0, %s162
      %s177 = sphi 0, %s163
      %s181 = sphi 0, %s181
      %s183 = sphi 0, %s181
      %s184 = sphi 0, %s183
      %s198 = sphi 0, %s184
      %s202 = sphi 0, %s202
      %s204 = sphi 0, %s202
      %s205 = sphi 0, %s204
      %s219 = sphi 0, %s205
      %s223 = sphi 0, %s223
      %s225 = sphi 0, %s223
      %s226 = sphi 0, %s225
      %s240 = sphi 0, %s226
      %s246 = sphi 0, %s248
      %s249 = sphi 0, %s246
      %s250 = sphi 0, %s249
      %s266 = sphi 0, %s250
      %s272 = sphi 0, %s274
      %s275 = sphi 0, %s272
      %s276 = sphi 0, %s275
      %s292 = sphi 0, %s276
    $region4: #{tpu_custom_call.1} parent=1 // loop_header_branch
      %24 = sbr.rel (%p22) target = $region8
    $region5: #{tpu_custom_call.1} parent=1 // loop_body
      %s26 = ssub.s32 %s21, 1
      %s27 = ssub.s32 %s21, 2
      %s28 = sadd.s32 %s21, 1
      %s29 = ssub.s32 %s21, %s28
      %p30 = scmp.eq.s32.totalorder %s29, 0
      %s32 = sadd.s32 %s31, 1
      %s33 = scalar_select %p30, %s31, %s32
      %p36 = pneg %p30
      %p37 = scmp.eq.s32.totalorder %s21, 2
      %p38 = por %p36, %p37
      %p39 = scmp.ne.s32.totalorder %s31, %s34
      %p40 = scmp.eq.s32.totalorder %s21, 0
      %p41 = por %p39, %p40
      %p42 = scmp.ne.s32.totalorder %s31, %s34
      %p43 = scmp.eq.s32.totalorder %s26, 2
      %p44 = por %p42, %p43
      %p45 = scmp.ne.s32.totalorder %s34, %s35
      %p46 = scmp.eq.s32.totalorder %s26, 0
      %p47 = por %p45, %p46
      %p48 = scmp.ne.s32.totalorder %s34, %s35
      %p49 = scmp.eq.s32.totalorder %s27, 2
      %p50 = por %p48, %p49
      %p52 = scmp.ne.s32.totalorder %s35, %s51
      %p53 = scmp.eq.s32.totalorder %s27, 0
      %p54 = por %p52, %p53
      %s56 = sadd.s32 %s55, 1
      %p59 = scmp.eq.s32.totalorder %s21, 2
      %p60 = scmp.ne.s32.totalorder %s55, %s57
      %p61 = scmp.eq.s32.totalorder %s21, 0
      %p62 = por %p60, %p61
      %p63 = scmp.ne.s32.totalorder %s55, %s57
      %p64 = scmp.eq.s32.totalorder %s26, 2
      %p65 = por %p63, %p64
      %p66 = scmp.ne.s32.totalorder %s57, %s58
      %p67 = scmp.eq.s32.totalorder %s26, 0
      %p68 = por %p66, %p67
      %p69 = scmp.ne.s32.totalorder %s57, %s58
      %p70 = scmp.eq.s32.totalorder %s27, 2
      %p71 = por %p69, %p70
      %p73 = scmp.ne.s32.totalorder %s58, %s72
      %p74 = scmp.eq.s32.totalorder %s27, 0
      %p75 = por %p73, %p74
      %s77 = sadd.s32 %s76, 1
      %p80 = scmp.eq.s32.totalorder %s21, 2
      %p81 = scmp.ne.s32.totalorder %s76, %s78
      %p82 = scmp.eq.s32.totalorder %s21, 0
      %p83 = por %p81, %p82
      %p84 = scmp.ne.s32.totalorder %s76, %s78
      %p85 = scmp.eq.s32.totalorder %s26, 2
      %p86 = por %p84, %p85
      %p87 = scmp.ne.s32.totalorder %s78, %s79
      %p88 = scmp.eq.s32.totalorder %s26, 0
      %p89 = por %p87, %p88
      %p90 = scmp.ne.s32.totalorder %s78, %s79
      %p91 = scmp.eq.s32.totalorder %s27, 2
      %p92 = por %p90, %p91
      %p94 = scmp.ne.s32.totalorder %s79, %s93
      %p95 = scmp.eq.s32.totalorder %s27, 0
      %p96 = por %p94, %p95
      %s98 = sadd.s32 %s97, 1
      %p101 = scmp.eq.s32.totalorder %s21, 2
      %p102 = scmp.ne.s32.totalorder %s97, %s99
      %p103 = scmp.eq.s32.totalorder %s21, 0
      %p104 = por %p102, %p103
      %p105 = scmp.ne.s32.totalorder %s97, %s99
      %p106 = scmp.eq.s32.totalorder %s26, 2
      %p107 = por %p105, %p106
      %p108 = scmp.ne.s32.totalorder %s99, %s100
      %p109 = scmp.eq.s32.totalorder %s26, 0
      %p110 = por %p108, %p109
      %p111 = scmp.ne.s32.totalorder %s99, %s100
      %p112 = scmp.eq.s32.totalorder %s27, 2
      %p113 = por %p111, %p112
      %p115 = scmp.ne.s32.totalorder %s100, %s114
      %p116 = scmp.eq.s32.totalorder %s27, 0
      %p117 = por %p115, %p116
      %s119 = sadd.s32 %s118, 1
      %p122 = scmp.eq.s32.totalorder %s21, 2
      %p123 = scmp.ne.s32.totalorder %s118, %s120
      %p124 = scmp.eq.s32.totalorder %s21, 0
      %p125 = por %p123, %p124
      %p126 = scmp.ne.s32.totalorder %s118, %s120
      %p127 = scmp.eq.s32.totalorder %s26, 2
      %p128 = por %p126, %p127
      %p129 = scmp.ne.s32.totalorder %s120, %s121
      %p130 = scmp.eq.s32.totalorder %s26, 0
      %p131 = por %p129, %p130
      %p132 = scmp.ne.s32.totalorder %s120, %s121
      %p133 = scmp.eq.s32.totalorder %s27, 2
      %p134 = por %p132, %p133
      %p136 = scmp.ne.s32.totalorder %s121, %s135
      %p137 = scmp.eq.s32.totalorder %s27, 0
      %p138 = por %p136, %p137
      %s140 = sadd.s32 %s139, 1
      %p143 = scmp.eq.s32.totalorder %s21, 2
      %p144 = scmp.ne.s32.totalorder %s139, %s141
      %p145 = scmp.eq.s32.totalorder %s21, 0
      %p146 = por %p144, %p145
      %p147 = scmp.ne.s32.totalorder %s139, %s141
      %p148 = scmp.eq.s32.totalorder %s26, 2
      %p149 = por %p147, %p148
      %p150 = scmp.ne.s32.totalorder %s141, %s142
      %p151 = scmp.eq.s32.totalorder %s26, 0
      %p152 = por %p150, %p151
      %p153 = scmp.ne.s32.totalorder %s141, %s142
      %p154 = scmp.eq.s32.totalorder %s27, 2
      %p155 = por %p153, %p154
      %p157 = scmp.ne.s32.totalorder %s142, %s156
      %p158 = scmp.eq.s32.totalorder %s27, 0
      %p159 = por %p157, %p158
      %s161 = sadd.s32 %s160, 1
      %p164 = scmp.eq.s32.totalorder %s21, 2
      %p165 = scmp.ne.s32.totalorder %s160, %s162
      %p166 = scmp.eq.s32.totalorder %s21, 0
      %p167 = por %p165, %p166
      %p168 = scmp.ne.s32.totalorder %s160, %s162
      %p169 = scmp.eq.s32.totalorder %s26, 2
      %p170 = por %p168, %p169
      %p171 = scmp.ne.s32.totalorder %s162, %s163
      %p172 = scmp.eq.s32.totalorder %s26, 0
      %p173 = por %p171, %p172
      %p174 = scmp.ne.s32.totalorder %s162, %s163
      %p175 = scmp.eq.s32.totalorder %s27, 2
      %p176 = por %p174, %p175
      %p178 = scmp.ne.s32.totalorder %s163, %s177
      %p179 = scmp.eq.s32.totalorder %s27, 0
      %p180 = por %p178, %p179
      %s182 = sadd.s32 %s181, 1
      %p185 = scmp.eq.s32.totalorder %s21, 2
      %p186 = scmp.ne.s32.totalorder %s181, %s183
      %p187 = scmp.eq.s32.totalorder %s21, 0
      %p188 = por %p186, %p187
      %p189 = scmp.ne.s32.totalorder %s181, %s183
      %p190 = scmp.eq.s32.totalorder %s26, 2
      %p191 = por %p189, %p190
      %p192 = scmp.ne.s32.totalorder %s183, %s184
      %p193 = scmp.eq.s32.totalorder %s26, 0
      %p194 = por %p192, %p193
      %p195 = scmp.ne.s32.totalorder %s183, %s184
      %p196 = scmp.eq.s32.totalorder %s27, 2
      %p197 = por %p195, %p196
      %p199 = scmp.ne.s32.totalorder %s184, %s198
      %p200 = scmp.eq.s32.totalorder %s27, 0
      %p201 = por %p199, %p200
      %s203 = sadd.s32 %s202, 1
      %p206 = scmp.eq.s32.totalorder %s21, 2
      %p207 = scmp.ne.s32.totalorder %s202, %s204
      %p208 = scmp.eq.s32.totalorder %s21, 0
      %p209 = por %p207, %p208
      %p210 = scmp.ne.s32.totalorder %s202, %s204
      %p211 = scmp.eq.s32.totalorder %s26, 2
      %p212 = por %p210, %p211
      %p213 = scmp.ne.s32.totalorder %s204, %s205
      %p214 = scmp.eq.s32.totalorder %s26, 0
      %p215 = por %p213, %p214
      %p216 = scmp.ne.s32.totalorder %s204, %s205
      %p217 = scmp.eq.s32.totalorder %s27, 2
      %p218 = por %p216, %p217
      %p220 = scmp.ne.s32.totalorder %s205, %s219
      %p221 = scmp.eq.s32.totalorder %s27, 0
      %p222 = por %p220, %p221
      %s224 = sadd.s32 %s223, 1
      %p227 = scmp.eq.s32.totalorder %s21, 2
      %p228 = scmp.ne.s32.totalorder %s223, %s225
      %p229 = scmp.eq.s32.totalorder %s21, 0
      %p230 = por %p228, %p229
      %p231 = scmp.ne.s32.totalorder %s223, %s225
      %p232 = scmp.eq.s32.totalorder %s26, 2
      %p233 = por %p231, %p232
      %p234 = scmp.ne.s32.totalorder %s225, %s226
      %p235 = scmp.eq.s32.totalorder %s26, 0
      %p236 = por %p234, %p235
      %p237 = scmp.ne.s32.totalorder %s225, %s226
      %p238 = scmp.eq.s32.totalorder %s27, 2
      %p239 = por %p237, %p238
      %p241 = scmp.ne.s32.totalorder %s226, %s240
      %p242 = scmp.eq.s32.totalorder %s27, 0
      %p243 = por %p241, %p242
      %s244 = ssub.s32 %s21, %s28
      %p245 = scmp.eq.s32.totalorder %s244, 0
      %s247 = sadd.s32 %s246, 1
      %s248 = scalar_select %p245, %s246, %s247
      %p251 = pneg %p245
      %p252 = scmp.eq.s32.totalorder %s21, 2
      %p253 = por %p251, %p252
      %p254 = scmp.ne.s32.totalorder %s246, %s249
      %p255 = scmp.eq.s32.totalorder %s21, 0
      %p256 = por %p254, %p255
      %p257 = scmp.ne.s32.totalorder %s246, %s249
      %p258 = scmp.eq.s32.totalorder %s26, 2
      %p259 = por %p257, %p258
      %p260 = scmp.ne.s32.totalorder %s249, %s250
      %p261 = scmp.eq.s32.totalorder %s26, 0
      %p262 = por %p260, %p261
      %p263 = scmp.ne.s32.totalorder %s249, %s250
      %p264 = scmp.eq.s32.totalorder %s27, 2
      %p265 = por %p263, %p264
      %p267 = scmp.ne.s32.totalorder %s250, %s266
      %p268 = scmp.eq.s32.totalorder %s27, 0
      %p269 = por %p267, %p268
      %s270 = ssub.s32 %s21, %s28
      %p271 = scmp.eq.s32.totalorder %s270, 0
      %s273 = sadd.s32 %s272, 1
      %s274 = scalar_select %p271, %s272, %s273
      %p277 = pneg %p271
      %p278 = scmp.eq.s32.totalorder %s21, 2
      %p279 = por %p277, %p278
      %p280 = scmp.ne.s32.totalorder %s272, %s275
      %p281 = scmp.eq.s32.totalorder %s21, 0
      %p282 = por %p280, %p281
      %p283 = scmp.ne.s32.totalorder %s272, %s275
      %p284 = scmp.eq.s32.totalorder %s26, 2
      %p285 = por %p283, %p284
      %p286 = scmp.ne.s32.totalorder %s275, %s276
      %p287 = scmp.eq.s32.totalorder %s26, 0
      %p288 = por %p286, %p287
      %p289 = scmp.ne.s32.totalorder %s275, %s276
      %p290 = scmp.eq.s32.totalorder %s27, 2
      %p291 = por %p289, %p290
      %p293 = scmp.ne.s32.totalorder %s276, %s292
      %p294 = scmp.eq.s32.totalorder %s27, 0
      %p295 = por %p293, %p294
      %p296 = scmp.le.s32.totalorder 1, %s21
      %p297 = scmp.lt.s32.totalorder %s21, 4
      %p298 = pnand %p296, %p297
      %p299 = pneg %p298
      // Predicated region
      $region9: #{tpu_custom_call.1} parent=5 // pred_check
        _
      $region10: #{tpu_custom_call.1} parent=5 // pred_check_branch
        %301 = sbr.rel (%p298) target = $region12
      $region11: #{tpu_custom_call.1} parent=5 // pred_region
        %s302 = ssub.s32 %s21, 1
        // Predicated region
        $region13: #{tpu_custom_call.1} parent=11 // pred_check
          %p303 = pneg %p68
        $region14: #{tpu_custom_call.1} parent=11 // pred_check_branch
          %305 = sbr.rel (%p303) target = $region16
        $region15: #{tpu_custom_call.1} parent=11 // pred_region
          %s307 = ssub.s32 128, 128
          %308 = vsyncadd [#allocation4], %s307
          %s310 = sshll.u32 [#allocation3], 4
          %s311 = int_to_ptr.vmem [resolvable:$true] %s310
          %313 = dma.hbm_to_vmem [thread:$0]  %s1, 128, %s311, [#allocation4]
        $region16: #{tpu_custom_call.1} parent=11 // pred_fallthru
          _
        // Predicated region
        $region17: #{tpu_custom_call.1} parent=11 // pred_check
          %p314 = pneg %p89
        $region18: #{tpu_custom_call.1} parent=11 // pred_check_branch
          %316 = sbr.rel (%p314) target = $region20
        $region19: #{tpu_custom_call.1} parent=11 // pred_region
          _
        $region20: #{tpu_custom_call.1} parent=11 // pred_fallthru
          _
        // Predicated region
        $region21: #{tpu_custom_call.1} parent=11 // pred_check
          %p317 = pneg %p110
        $region22: #{tpu_custom_call.1} parent=11 // pred_check_branch
          %319 = sbr.rel (%p317) target = $region24
        $region23: #{tpu_custom_call.1} parent=11 // pred_region
          _
        $region24: #{tpu_custom_call.1} parent=11 // pred_fallthru
          _
        // Predicated region
        $region25: #{tpu_custom_call.1} parent=11 // pred_check
          %p320 = pneg %p131
        $region26: #{tpu_custom_call.1} parent=11 // pred_check_branch
          %322 = sbr.rel (%p320) target = $region28
        $region27: #{tpu_custom_call.1} parent=11 // pred_region
          _
        $region28: #{tpu_custom_call.1} parent=11 // pred_fallthru
          _
        // Predicated region
        $region29: #{tpu_custom_call.1} parent=11 // pred_check
          %p323 = pneg %p152
        $region30: #{tpu_custom_call.1} parent=11 // pred_check_branch
          %325 = sbr.rel (%p323) target = $region32
        $region31: #{tpu_custom_call.1} parent=11 // pred_region
          _
        $region32: #{tpu_custom_call.1} parent=11 // pred_fallthru
          _
        // Predicated region
        $region33: #{tpu_custom_call.1} parent=11 // pred_check
          %p326 = pneg %p173
        $region34: #{tpu_custom_call.1} parent=11 // pred_check_branch
          %328 = sbr.rel (%p326) target = $region36
        $region35: #{tpu_custom_call.1} parent=11 // pred_region
          _
        $region36: #{tpu_custom_call.1} parent=11 // pred_fallthru
          _
        // Predicated region
        $region37: #{tpu_custom_call.1} parent=11 // pred_check
          %p329 = pneg %p194
        $region38: #{tpu_custom_call.1} parent=11 // pred_check_branch
          %331 = sbr.rel (%p329) target = $region40
        $region39: #{tpu_custom_call.1} parent=11 // pred_region
          _
        $region40: #{tpu_custom_call.1} parent=11 // pred_fallthru
          _
        // Predicated region
        $region41: #{tpu_custom_call.1} parent=11 // pred_check
          %p332 = pneg %p215
        $region42: #{tpu_custom_call.1} parent=11 // pred_check_branch
          %334 = sbr.rel (%p332) target = $region44
        $region43: #{tpu_custom_call.1} parent=11 // pred_region
          _
        $region44: #{tpu_custom_call.1} parent=11 // pred_fallthru
          _
        // Predicated region
        $region45: #{tpu_custom_call.1} parent=11 // pred_check
          %p335 = pneg %p236
        $region46: #{tpu_custom_call.1} parent=11 // pred_check_branch
          %337 = sbr.rel (%p335) target = $region48
        $region47: #{tpu_custom_call.1} parent=11 // pred_region
          _
        $region48: #{tpu_custom_call.1} parent=11 // pred_fallthru
          _
      $region12: #{tpu_custom_call.1} parent=5 // pred_fallthru
        _
      %p338 = scmp.lt.s32.totalorder %s21, 3
      // Predicated region
      $region49: #{tpu_custom_call.1} parent=5 // pred_check
        %p339 = pneg %p338
      $region50: #{tpu_custom_call.1} parent=5 // pred_check_branch
        %341 = sbr.rel (%p339) target = $region52
      $region51: #{tpu_custom_call.1} parent=5 // pred_region
        // Predicated region
        $region53: #{tpu_custom_call.1} parent=51 // pred_check
          %p342 = pneg %p41
        $region54: #{tpu_custom_call.1} parent=51 // pred_check_branch
          %344 = sbr.rel (%p342) target = $region56
        $region55: #{tpu_custom_call.1} parent=51 // pred_region
          %p345 = scmp.lt.s32.totalorder %s21, 2
          %s346 = scalar_select %p345, %s21, 2
          %s347 = smul.addr %s346, 8
          %s348 = scalar_lea.vmem %s0, %s347
        $region56: #{tpu_custom_call.1} parent=51 // pred_fallthru
          _
      $region52: #{tpu_custom_call.1} parent=5 // pred_fallthru
        _
      %p349 = scmp.le.s32.totalorder 1, %s21
      %p350 = scmp.lt.s32.totalorder %s21, 4
      %p351 = pnand %p349, %p350
      %p352 = pneg %p351
      // Predicated region
      $region57: #{tpu_custom_call.1} parent=5 // pred_check
        _
      $region58: #{tpu_custom_call.1} parent=5 // pred_check_branch
        %354 = sbr.rel (%p351) target = $region60
      $region59: #{tpu_custom_call.1} parent=5 // pred_region
        %s355 = ssub.s32 %s21, 1
        // Predicated region
        $region61: #{tpu_custom_call.1} parent=59 // pred_check
          %p356 = pneg %p68
        $region62: #{tpu_custom_call.1} parent=59 // pred_check_branch
          %358 = sbr.rel (%p356) target = $region64
        $region63: #{tpu_custom_call.1} parent=59 // pred_region
          %359 = dma.done [#allocation4], 128
        $region64: #{tpu_custom_call.1} parent=59 // pred_fallthru
          _
        %p360 = scmp.lt.s32.totalorder %s26, 2
        %s361 = scalar_select %p360, %s26, 2
        %s362 = smul.addr %s361, 8
        %s363 = scalar_lea.vmem %s0, %s362
        %p364 = pneg %p47
        %p365 = pneg %p44
        %p366 = pneg %p68
        %p367 = pneg %p65
        %p368 = pneg %p89
        %p369 = pneg %p86
        %p370 = pneg %p110
        %p371 = pneg %p107
        %p372 = pneg %p131
        %p373 = pneg %p128
        %p374 = pneg %p152
        %p375 = pneg %p149
        %p376 = pneg %p173
        %p377 = pneg %p170
        %p378 = pneg %p194
        %p379 = pneg %p191
        %p380 = pneg %p215
        %p381 = pneg %p212
        %p382 = pneg %p236
        %p383 = pneg %p233
        %p384 = pneg %p262
        %p385 = pneg %p259
        %p386 = scmp.lt.s32.totalorder %s26, 2
        %s387 = scalar_select %p386, %s26, 2
        %s388 = smul.addr %s387, 8
        %s389 = scalar_lea.vmem %s10, %s388
        %p390 = pneg %p288
        %p391 = pneg %p285
        %p392 = scmp.lt.s32.totalorder %s26, 2
        %s393 = scalar_select %p392, %s26, 2
        %s394 = smul.addr %s393, 8
        %s395 = scalar_lea.vmem %s11, %s394
        %p396 = scmp.lt.s32.totalorder %s26, 2
        %s397 = scalar_select %p396, %s26, 2
        %s398 = smul.addr %s397, 8
        %s399 = scalar_lea.vmem %s0, %s398
        %p400 = scmp.lt.s32.totalorder %s26, 2
        %s401 = scalar_select %p400, %s26, 2
        %s402 = smul.addr %s401, 8
        %s403 = scalar_lea.vmem %s10, %s402
        %p404 = scmp.lt.s32.totalorder %s26, 2
        %s405 = scalar_select %p404, %s26, 2
        %s406 = smul.addr %s405, 8
        %s407 = scalar_lea.vmem %s11, %s406
        %v408 = vld [vmem:[%s399] sm:$0xff]
        %v409 = vld [vmem:[#allocation3] sm:$0xff]
        %v410 = vld [vmem:[%s2] sm:$0x1]
        %v412 = vlaneseq
        %v413 = vshrl.u32 %v412, 7
        %v414 = vsub.s32 0, %v413
        %v415 = vrot.slane %v410, %v414
        %vm417 = vcmask 64512
        %v419 = vsel %vm417, %v408, 0
        %421 = vmatprep.subr.mxu0 0.0
        %422 = vmatpush1.msra.mxu0 %v409
        %423 = vmatprep.subr.mxu0 0.0
        %424 = vmatpush1.msra.mxu0 0.0
        %425 = vmatprep.subr.mxu0 0.0
        %426 = vmatpush1.msra.mxu0 0.0
        %427 = vmatprep.subr.mxu0 0.0
        %428 = vmatpush1.msra.mxu0 0.0
        %429 = vmatprep.subr.mxu0 0.0
        %430 = vmatpush1.msra.mxu0 0.0
        %431 = vmatprep.subr.mxu0 0.0
        %432 = vmatpush1.msra.mxu0 0.0
        %433 = vmatprep.subr.mxu0 0.0
        %434 = vmatpush1.msra.mxu0 0.0
        %435 = vmatprep.subr.mxu0 0.0
        %436 = vmatpush1.msra.mxu0 0.0
        %437 = vmatprep.subr.mxu0 0.0
        %438 = vmatpush1.msra.mxu0 0.0
        %439 = vmatprep.subr.mxu0 0.0
        %440 = vmatpush1.msra.mxu0 0.0
        %441 = vmatprep.subr.mxu0 0.0
        %442 = vmatpush1.msra.mxu0 0.0
        %443 = vmatprep.subr.mxu0 0.0
        %444 = vmatpush1.msra.mxu0 0.0
        %445 = vmatprep.subr.mxu0 0.0
        %446 = vmatpush1.msra.mxu0 0.0
        %447 = vmatprep.subr.mxu0 0.0
        %448 = vmatpush1.msra.mxu0 0.0
        %449 = vmatprep.subr.mxu0 0.0
        %450 = vmatpush1.msra.mxu0 0.0
        %451 = vmatprep.subr.mxu0 0.0
        %452 = vmatpush1.msra.mxu0 0.0
        %453 = vmatprep.subr.mxu0 0.0
        %454 = vmatpush1.msra.mxu0 0.0
        %455 = vmatprep.subr.mxu0 0.0
        %456 = vmatpush1.msra.mxu0 0.0
        %457 = vmatprep.subr.mxu0 0.0
        %458 = vmatpush1.msra.mxu0 0.0
        %459 = vmatprep.subr.mxu0 0.0
        %460 = vmatpush1.msra.mxu0 0.0
        %461 = vmatprep.subr.mxu0 0.0
        %462 = vmatpush1.msra.mxu0 0.0
        %463 = vmatprep.subr.mxu0 0.0
        %464 = vmatpush1.msra.mxu0 0.0
        %465 = vmatprep.subr.mxu0 0.0
        %466 = vmatpush1.msra.mxu0 0.0
        %467 = vmatprep.subr.mxu0 0.0
        %468 = vmatpush1.msra.mxu0 0.0
        %469 = vmatprep.subr.mxu0 0.0
        %470 = vmatpush1.msra.mxu0 0.0
        %471 = vmatprep.subr.mxu0 0.0
        %472 = vmatpush1.msra.mxu0 0.0
        %473 = vmatprep.subr.mxu0 0.0
        %474 = vmatpush1.msra.mxu0 0.0
        %475 = vmatprep.subr.mxu0 0.0
        %476 = vmatpush1.msra.mxu0 0.0
        %477 = vmatprep.subr.mxu0 0.0
        %478 = vmatpush1.msra.mxu0 0.0
        %479 = vmatprep.subr.mxu0 0.0
        %480 = vmatpush1.msra.mxu0 0.0
        %481 = vmatprep.subr.mxu0 0.0
        %482 = vmatpush1.msra.mxu0 0.0
        %483 = vmatprep.subr.mxu0 0.0
        %484 = vmatpush1.msra.mxu0 0.0
        %485 = vmatprep.mubr.f32.mxu0 0.0
        %486 = vmatmul.mubr.f32.gmra.mrb[0].mxu0 %v419
        %v487 = vpop.f32.mrb[0].mxu0
        %v488 = vadd.f32 %v415, %v487
        %v489 = vpop.f32.mrb[0].mxu0
        %490 = vdwg.mxu0
        %v491 = vand.u32 2147483647, %v488
        %v492 = vsub.f32 0.0, %v491
        %v493 = vmul.f32 %v492, 1.442695
        %v494 = vpow.pop %v493
        %v495 = vmax.f32 %v488, 0.0
        %v496 = vadd.f32 %v494, 1.0
        %v497 = vlog2.pop %v496
        %v498 = vmul.f32 %v497, 0.6931472
        %v499 = vmul.f32 -0.5, %v494
        %v500 = vadd.f32 %v499, 1.0
        %v501 = vmul.f32 %v500, %v494
        %v502 = vand.u32 2147483647, %v494
        %vm503 = vcmp.lt.f32.partialorder %v502, 0.0004427343
        %v504 = vsel %vm503, %v501, %v498
        %v505 = vadd.f32 %v495, %v504
        %vm506 = vcmp.ge.f32.partialorder %v488, 0.0
        %v507 = vsel %vm506, 1.0, %v494
        %v508 = vadd.f32 %v494, 1.0
        %v509 = vrcp.pop %v508
        %v510 = vmul.f32 %v507, %v509
        %v511 = vld [vmem:[%s3] sm:$0xff]
        %v512 = vld [vmem:[%s3 + $0x8] sm:$0xff]
        %v513 = vld [vmem:[%s3 + $0x10] sm:$0xff]
        %v514 = vld [vmem:[%s3 + $0x18] sm:$0xff]
        %v515 = vld [vmem:[%s4] sm:$0x1]
        %v517 = vlaneseq
        %v518 = vshrl.u32 %v517, 7
        %v519 = vsub.s32 0, %v518
        %v520 = vrot.slane %v515, %v519
        %vm522 = vcmask 261120
        %v524 = vsel %vm522, %v505, 0
        %526 = vmatprep.subr.mxu0 0.0
        %527 = vmatpush1.msra.mxu0 %v511
        %528 = vmatprep.subr.mxu0 0.0
        %529 = vmatpush1.msra.mxu0 %v512
        %530 = vmatprep.subr.mxu0 0.0
        %531 = vmatpush1.msra.mxu0 %v513
        %532 = vmatprep.subr.mxu0 0.0
        %533 = vmatpush1.msra.mxu0 %v514
        %534 = vmatprep.subr.mxu0 0.0
        %535 = vmatpush1.msra.mxu0 0.0
        %536 = vmatprep.subr.mxu0 0.0
        %537 = vmatpush1.msra.mxu0 0.0
        %538 = vmatprep.subr.mxu0 0.0
        %539 = vmatpush1.msra.mxu0 0.0
        %540 = vmatprep.subr.mxu0 0.0
        %541 = vmatpush1.msra.mxu0 0.0
        %542 = vmatprep.subr.mxu0 0.0
        %543 = vmatpush1.msra.mxu0 0.0
        %544 = vmatprep.subr.mxu0 0.0
        %545 = vmatpush1.msra.mxu0 0.0
        %546 = vmatprep.subr.mxu0 0.0
        %547 = vmatpush1.msra.mxu0 0.0
        %548 = vmatprep.subr.mxu0 0.0
        %549 = vmatpush1.msra.mxu0 0.0
        %550 = vmatprep.subr.mxu0 0.0
        %551 = vmatpush1.msra.mxu0 0.0
        %552 = vmatprep.subr.mxu0 0.0
        %553 = vmatpush1.msra.mxu0 0.0
        %554 = vmatprep.subr.mxu0 0.0
        %555 = vmatpush1.msra.mxu0 0.0
        %556 = vmatprep.subr.mxu0 0.0
        %557 = vmatpush1.msra.mxu0 0.0
        %558 = vmatprep.subr.mxu0 0.0
        %559 = vmatpush1.msra.mxu0 0.0
        %560 = vmatprep.subr.mxu0 0.0
        %561 = vmatpush1.msra.mxu0 0.0
        %562 = vmatprep.subr.mxu0 0.0
        %563 = vmatpush1.msra.mxu0 0.0
        %564 = vmatprep.subr.mxu0 0.0
        %565 = vmatpush1.msra.mxu0 0.0
        %566 = vmatprep.subr.mxu0 0.0
        %567 = vmatpush1.msra.mxu0 0.0
        %568 = vmatprep.subr.mxu0 0.0
        %569 = vmatpush1.msra.mxu0 0.0
        %570 = vmatprep.subr.mxu0 0.0
        %571 = vmatpush1.msra.mxu0 0.0
        %572 = vmatprep.subr.mxu0 0.0
        %573 = vmatpush1.msra.mxu0 0.0
        %574 = vmatprep.subr.mxu0 0.0
        %575 = vmatpush1.msra.mxu0 0.0
        %576 = vmatprep.subr.mxu0 0.0
        %577 = vmatpush1.msra.mxu0 0.0
        %578 = vmatprep.subr.mxu0 0.0
        %579 = vmatpush1.msra.mxu0 0.0
        %580 = vmatprep.subr.mxu0 0.0
        %581 = vmatpush1.msra.mxu0 0.0
        %582 = vmatprep.subr.mxu0 0.0
        %583 = vmatpush1.msra.mxu0 0.0
        %584 = vmatprep.subr.mxu0 0.0
        %585 = vmatpush1.msra.mxu0 0.0
        %586 = vmatprep.subr.mxu0 0.0
        %587 = vmatpush1.msra.mxu0 0.0
        %588 = vmatprep.subr.mxu0 0.0
        %589 = vmatpush1.msra.mxu0 0.0
        %590 = vmatprep.mubr.f32.mxu0 0.0
        %591 = vmatmul.mubr.f32.gmra.mrb[0].mxu0 %v524
        %v592 = vpop.f32.mrb[0].mxu0
        %v593 = vadd.f32 %v520, %v592
        %v594 = vpop.f32.mrb[0].mxu0
        %595 = vdwg.mxu0
        %v596 = vand.u32 2147483647, %v593
        %v597 = vsub.f32 0.0, %v596
        %v598 = vmul.f32 %v597, 1.442695
        %v599 = vpow.pop %v598
        %v600 = vmax.f32 %v593, 0.0
        %v601 = vadd.f32 %v599, 1.0
        %v602 = vlog2.pop %v601
        %v603 = vmul.f32 %v602, 0.6931472
        %v604 = vmul.f32 -0.5, %v599
        %v605 = vadd.f32 %v604, 1.0
        %v606 = vmul.f32 %v605, %v599
        %v607 = vand.u32 2147483647, %v599
        %vm608 = vcmp.lt.f32.partialorder %v607, 0.0004427343
        %v609 = vsel %vm608, %v606, %v603
        %v610 = vadd.f32 %v600, %v609
        %vm611 = vcmp.ge.f32.partialorder %v593, 0.0
        %v612 = vsel %vm611, 1.0, %v599
        %v613 = vadd.f32 %v599, 1.0
        %v614 = vrcp.pop %v613
        %v615 = vmul.f32 %v612, %v614
        %v616 = vld [vmem:[%s5] sm:$0xff]
        %v617 = vld [vmem:[%s5 + $0x8] sm:$0xff]
        %v618 = vld [vmem:[%s5 + $0x10] sm:$0xff]
        %v619 = vld [vmem:[%s5 + $0x18] sm:$0xff]
        %v620 = vld [vmem:[%s6] sm:$0x1]
        %v622 = vlaneseq
        %v623 = vshrl.u32 %v622, 7
        %v624 = vsub.s32 0, %v623
        %v625 = vrot.slane %v620, %v624
        %v628 = vsel %vm522, %v610, 0
        %630 = vmatprep.subr.mxu0 0.0
        %631 = vmatpush1.msra.mxu0 %v616
        %632 = vmatprep.subr.mxu0 0.0
        %633 = vmatpush1.msra.mxu0 %v617
        %634 = vmatprep.subr.mxu0 0.0
        %635 = vmatpush1.msra.mxu0 %v618
        %636 = vmatprep.subr.mxu0 0.0
        %637 = vmatpush1.msra.mxu0 %v619
        %638 = vmatprep.subr.mxu0 0.0
        %639 = vmatpush1.msra.mxu0 0.0
        %640 = vmatprep.subr.mxu0 0.0
        %641 = vmatpush1.msra.mxu0 0.0
        %642 = vmatprep.subr.mxu0 0.0
        %643 = vmatpush1.msra.mxu0 0.0
        %644 = vmatprep.subr.mxu0 0.0
        %645 = vmatpush1.msra.mxu0 0.0
        %646 = vmatprep.subr.mxu0 0.0
        %647 = vmatpush1.msra.mxu0 0.0
        %648 = vmatprep.subr.mxu0 0.0
        %649 = vmatpush1.msra.mxu0 0.0
        %650 = vmatprep.subr.mxu0 0.0
        %651 = vmatpush1.msra.mxu0 0.0
        %652 = vmatprep.subr.mxu0 0.0
        %653 = vmatpush1.msra.mxu0 0.0
        %654 = vmatprep.subr.mxu0 0.0
        %655 = vmatpush1.msra.mxu0 0.0
        %656 = vmatprep.subr.mxu0 0.0
        %657 = vmatpush1.msra.mxu0 0.0
        %658 = vmatprep.subr.mxu0 0.0
        %659 = vmatpush1.msra.mxu0 0.0
        %660 = vmatprep.subr.mxu0 0.0
        %661 = vmatpush1.msra.mxu0 0.0
        %662 = vmatprep.subr.mxu0 0.0
        %663 = vmatpush1.msra.mxu0 0.0
        %664 = vmatprep.subr.mxu0 0.0
        %665 = vmatpush1.msra.mxu0 0.0
        %666 = vmatprep.subr.mxu0 0.0
        %667 = vmatpush1.msra.mxu0 0.0
        %668 = vmatprep.subr.mxu0 0.0
        %669 = vmatpush1.msra.mxu0 0.0
        %670 = vmatprep.subr.mxu0 0.0
        %671 = vmatpush1.msra.mxu0 0.0
        %672 = vmatprep.subr.mxu0 0.0
        %673 = vmatpush1.msra.mxu0 0.0
        %674 = vmatprep.subr.mxu0 0.0
        %675 = vmatpush1.msra.mxu0 0.0
        %676 = vmatprep.subr.mxu0 0.0
        %677 = vmatpush1.msra.mxu0 0.0
        %678 = vmatprep.subr.mxu0 0.0
        %679 = vmatpush1.msra.mxu0 0.0
        %680 = vmatprep.subr.mxu0 0.0
        %681 = vmatpush1.msra.mxu0 0.0
        %682 = vmatprep.subr.mxu0 0.0
        %683 = vmatpush1.msra.mxu0 0.0
        %684 = vmatprep.subr.mxu0 0.0
        %685 = vmatpush1.msra.mxu0 0.0
        %686 = vmatprep.subr.mxu0 0.0
        %687 = vmatpush1.msra.mxu0 0.0
        %688 = vmatprep.subr.mxu0 0.0
        %689 = vmatpush1.msra.mxu0 0.0
        %690 = vmatprep.subr.mxu0 0.0
        %691 = vmatpush1.msra.mxu0 0.0
        %692 = vmatprep.subr.mxu0 0.0
        %693 = vmatpush1.msra.mxu0 0.0
        %694 = vmatprep.mubr.f32.mxu0 0.0
        %695 = vmatmul.mubr.f32.gmra.mrb[0].mxu0 %v628
        %v696 = vpop.f32.mrb[0].mxu0
        %v697 = vadd.f32 %v625, %v696
        %v698 = vpop.f32.mrb[0].mxu0
        %699 = vdwg.mxu0
        %v700 = vand.u32 2147483647, %v697
        %v701 = vsub.f32 0.0, %v700
        %v702 = vmul.f32 %v701, 1.442695
        %v703 = vpow.pop %v702
        %v704 = vmax.f32 %v697, 0.0
        %v705 = vadd.f32 %v703, 1.0
        %v706 = vlog2.pop %v705
        %v707 = vmul.f32 %v706, 0.6931472
        %v708 = vmul.f32 -0.5, %v703
        %v709 = vadd.f32 %v708, 1.0
        %v710 = vmul.f32 %v709, %v703
        %v711 = vand.u32 2147483647, %v703
        %vm712 = vcmp.lt.f32.partialorder %v711, 0.0004427343
        %v713 = vsel %vm712, %v710, %v707
        %v714 = vadd.f32 %v704, %v713
        %vm715 = vcmp.ge.f32.partialorder %v697, 0.0
        %v716 = vsel %vm715, 1.0, %v703
        %v717 = vadd.f32 %v703, 1.0
        %v718 = vrcp.pop %v717
        %v719 = vmul.f32 %v716, %v718
        %v720 = vld [vmem:[%s7] sm:$0x1]
        %v722 = vlaneseq
        %v723 = vshrl.u32 %v722, 7
        %v724 = vsub.s32 0, %v723
        %v725 = vrot.slane %v720, %v724
        %v727 = vmul.f32 %v714, %v725
        %v728 = vsel %vm522, %v727, 0.0
        %729 = vadd.xlane.f32.xlu0 %v728
        %v730 = vpop.xlane.xlu0 %729
        %v731 = vld [vmem:[#allocation2] sm:$0x1]
        %v733 = vlaneseq
        %v734 = vshrl.u32 %v733, 7
        %v735 = vsub.s32 0, %v734
        %v736 = vrot.slane %v731, %v735
        %v738 = vadd.f32 %v730, %v736
        %vm739 = vcmask 7168
        %740 = vst.msk [vmem:[%s403] sm:$0xff] %vm739, %v738
        %v741 = vmul.f32 %v725, %v719
        %v742 = vld [vmem:[%s5] sm:$0xff]
        %v743 = vld [vmem:[%s5 + $0x8] sm:$0xff]
        %v744 = vld [vmem:[%s5 + $0x10] sm:$0xff]
        %v745 = vld [vmem:[%s5 + $0x18] sm:$0xff]
        %v747 = vsel %vm522, %v741, 0
        %v750 = vsel %vm522, %v742, 0
        %v753 = vsel %vm522, %v743, 0
        %v756 = vsel %vm522, %v744, 0
        %v759 = vsel %vm522, %v745, 0
        %761 = vmatprep.subr.mxu0 0.0
        %762 = vmatpush1.xpose.msra.mxu0 %v750
        %763 = vmatprep.subr.mxu0 0.0
        %764 = vmatpush1.xpose.msra.mxu0 %v753
        %765 = vmatprep.subr.mxu0 0.0
        %766 = vmatpush1.xpose.msra.mxu0 %v756
        %767 = vmatprep.subr.mxu0 0.0
        %768 = vmatpush1.xpose.msra.mxu0 %v759
        %769 = vmatprep.subr.mxu0 0.0
        %770 = vmatpush1.xpose.msra.mxu0 0.0
        %771 = vmatprep.subr.mxu0 0.0
        %772 = vmatpush1.xpose.msra.mxu0 0.0
        %773 = vmatprep.subr.mxu0 0.0
        %774 = vmatpush1.xpose.msra.mxu0 0.0
        %775 = vmatprep.subr.mxu0 0.0
        %776 = vmatpush1.xpose.msra.mxu0 0.0
        %777 = vmatprep.subr.mxu0 0.0
        %778 = vmatpush1.xpose.msra.mxu0 0.0
        %779 = vmatprep.subr.mxu0 0.0
        %780 = vmatpush1.xpose.msra.mxu0 0.0
        %781 = vmatprep.subr.mxu0 0.0
        %782 = vmatpush1.xpose.msra.mxu0 0.0
        %783 = vmatprep.subr.mxu0 0.0
        %784 = vmatpush1.xpose.msra.mxu0 0.0
        %785 = vmatprep.subr.mxu0 0.0
        %786 = vmatpush1.xpose.msra.mxu0 0.0
        %787 = vmatprep.subr.mxu0 0.0
        %788 = vmatpush1.xpose.msra.mxu0 0.0
        %789 = vmatprep.subr.mxu0 0.0
        %790 = vmatpush1.xpose.msra.mxu0 0.0
        %791 = vmatprep.subr.mxu0 0.0
        %792 = vmatpush1.xpose.msra.mxu0 0.0
        %793 = vmatprep.subr.mxu0 0.0
        %794 = vmatpush1.xpose.msra.mxu0 0.0
        %795 = vmatprep.subr.mxu0 0.0
        %796 = vmatpush1.xpose.msra.mxu0 0.0
        %797 = vmatprep.subr.mxu0 0.0
        %798 = vmatpush1.xpose.msra.mxu0 0.0
        %799 = vmatprep.subr.mxu0 0.0
        %800 = vmatpush1.xpose.msra.mxu0 0.0
        %801 = vmatprep.subr.mxu0 0.0
        %802 = vmatpush1.xpose.msra.mxu0 0.0
        %803 = vmatprep.subr.mxu0 0.0
        %804 = vmatpush1.xpose.msra.mxu0 0.0
        %805 = vmatprep.subr.mxu0 0.0
        %806 = vmatpush1.xpose.msra.mxu0 0.0
        %807 = vmatprep.subr.mxu0 0.0
        %808 = vmatpush1.xpose.msra.mxu0 0.0
        %809 = vmatprep.subr.mxu0 0.0
        %810 = vmatpush1.xpose.msra.mxu0 0.0
        %811 = vmatprep.subr.mxu0 0.0
        %812 = vmatpush1.xpose.msra.mxu0 0.0
        %813 = vmatprep.subr.mxu0 0.0
        %814 = vmatpush1.xpose.msra.mxu0 0.0
        %815 = vmatprep.subr.mxu0 0.0
        %816 = vmatpush1.xpose.msra.mxu0 0.0
        %817 = vmatprep.subr.mxu0 0.0
        %818 = vmatpush1.xpose.msra.mxu0 0.0
        %819 = vmatprep.subr.mxu0 0.0
        %820 = vmatpush1.xpose.msra.mxu0 0.0
        %821 = vmatprep.subr.mxu0 0.0
        %822 = vmatpush1.xpose.msra.mxu0 0.0
        %823 = vmatprep.subr.mxu0 0.0
        %824 = vmatpush1.xpose.msra.mxu0 0.0
        %825 = vmatprep.mubr.f32.mxu0 0.0
        %826 = vmatmul.mubr.f32.gmra.mrb[0].mxu0 %v747
        %v827 = vpop.f32.mrb[0].mxu0
        %v828 = vadd.f32 0.0, %v827
        %v829 = vpop.f32.mrb[0].mxu0
        %830 = vdwg.mxu0
        %v831 = vmul.f32 %v828, %v615
        %v832 = vld [vmem:[%s3] sm:$0xff]
        %v833 = vld [vmem:[%s3 + $0x8] sm:$0xff]
        %v834 = vld [vmem:[%s3 + $0x10] sm:$0xff]
        %v835 = vld [vmem:[%s3 + $0x18] sm:$0xff]
        %v837 = vsel %vm522, %v831, 0
        %v840 = vsel %vm522, %v832, 0
        %v843 = vsel %vm522, %v833, 0
        %v846 = vsel %vm522, %v834, 0
        %v849 = vsel %vm522, %v835, 0
        %851 = vmatprep.subr.mxu0 0.0
        %852 = vmatpush1.xpose.msra.mxu0 %v840
        %853 = vmatprep.subr.mxu0 0.0
        %854 = vmatpush1.xpose.msra.mxu0 %v843
        %855 = vmatprep.subr.mxu0 0.0
        %856 = vmatpush1.xpose.msra.mxu0 %v846
        %857 = vmatprep.subr.mxu0 0.0
        %858 = vmatpush1.xpose.msra.mxu0 %v849
        %859 = vmatprep.subr.mxu0 0.0
        %860 = vmatpush1.xpose.msra.mxu0 0.0
        %861 = vmatprep.subr.mxu0 0.0
        %862 = vmatpush1.xpose.msra.mxu0 0.0
        %863 = vmatprep.subr.mxu0 0.0
        %864 = vmatpush1.xpose.msra.mxu0 0.0
        %865 = vmatprep.subr.mxu0 0.0
        %866 = vmatpush1.xpose.msra.mxu0 0.0
        %867 = vmatprep.subr.mxu0 0.0
        %868 = vmatpush1.xpose.msra.mxu0 0.0
        %869 = vmatprep.subr.mxu0 0.0
        %870 = vmatpush1.xpose.msra.mxu0 0.0
        %871 = vmatprep.subr.mxu0 0.0
        %872 = vmatpush1.xpose.msra.mxu0 0.0
        %873 = vmatprep.subr.mxu0 0.0
        %874 = vmatpush1.xpose.msra.mxu0 0.0
        %875 = vmatprep.subr.mxu0 0.0
        %876 = vmatpush1.xpose.msra.mxu0 0.0
        %877 = vmatprep.subr.mxu0 0.0
        %878 = vmatpush1.xpose.msra.mxu0 0.0
        %879 = vmatprep.subr.mxu0 0.0
        %880 = vmatpush1.xpose.msra.mxu0 0.0
        %881 = vmatprep.subr.mxu0 0.0
        %882 = vmatpush1.xpose.msra.mxu0 0.0
        %883 = vmatprep.subr.mxu0 0.0
        %884 = vmatpush1.xpose.msra.mxu0 0.0
        %885 = vmatprep.subr.mxu0 0.0
        %886 = vmatpush1.xpose.msra.mxu0 0.0
        %887 = vmatprep.subr.mxu0 0.0
        %888 = vmatpush1.xpose.msra.mxu0 0.0
        %889 = vmatprep.subr.mxu0 0.0
        %890 = vmatpush1.xpose.msra.mxu0 0.0
        %891 = vmatprep.subr.mxu0 0.0
        %892 = vmatpush1.xpose.msra.mxu0 0.0
        %893 = vmatprep.subr.mxu0 0.0
        %894 = vmatpush1.xpose.msra.mxu0 0.0
        %895 = vmatprep.subr.mxu0 0.0
        %896 = vmatpush1.xpose.msra.mxu0 0.0
        %897 = vmatprep.subr.mxu0 0.0
        %898 = vmatpush1.xpose.msra.mxu0 0.0
        %899 = vmatprep.subr.mxu0 0.0
        %900 = vmatpush1.xpose.msra.mxu0 0.0
        %901 = vmatprep.subr.mxu0 0.0
        %902 = vmatpush1.xpose.msra.mxu0 0.0
        %903 = vmatprep.subr.mxu0 0.0
        %904 = vmatpush1.xpose.msra.mxu0 0.0
        %905 = vmatprep.subr.mxu0 0.0
        %906 = vmatpush1.xpose.msra.mxu0 0.0
        %907 = vmatprep.subr.mxu0 0.0
        %908 = vmatpush1.xpose.msra.mxu0 0.0
        %909 = vmatprep.subr.mxu0 0.0
        %910 = vmatpush1.xpose.msra.mxu0 0.0
        %911 = vmatprep.subr.mxu0 0.0
        %912 = vmatpush1.xpose.msra.mxu0 0.0
        %913 = vmatprep.subr.mxu0 0.0
        %914 = vmatpush1.xpose.msra.mxu0 0.0
        %915 = vmatprep.mubr.f32.mxu0 0.0
        %916 = vmatmul.mubr.f32.gmra.mrb[0].mxu0 %v837
        %v917 = vpop.f32.mrb[0].mxu0
        %v918 = vadd.f32 0.0, %v917
        %v919 = vpop.f32.mrb[0].mxu0
        %920 = vdwg.mxu0
        %v921 = vmul.f32 %v918, %v510
        %v922 = vld [vmem:[%s9] sm:$0xff]
        %v923 = vld [vmem:[%s9 + $0x8] sm:$0xff]
        %v924 = vld [vmem:[%s9 + $0x10] sm:$0xff]
        %v925 = vld [vmem:[%s9 + $0x18] sm:$0xff]
        %v927 = vsel %vm522, %v921, 0
        %929 = vmatprep.subr.mxu0 0.0
        %930 = vmatpush1.msra.mxu0 %v922
        %931 = vmatprep.subr.mxu0 0.0
        %932 = vmatpush1.msra.mxu0 %v923
        %933 = vmatprep.subr.mxu0 0.0
        %934 = vmatpush1.msra.mxu0 %v924
        %935 = vmatprep.subr.mxu0 0.0
        %936 = vmatpush1.msra.mxu0 %v925
        %937 = vmatprep.subr.mxu0 0.0
        %938 = vmatpush1.msra.mxu0 0.0
        %939 = vmatprep.subr.mxu0 0.0
        %940 = vmatpush1.msra.mxu0 0.0
        %941 = vmatprep.subr.mxu0 0.0
        %942 = vmatpush1.msra.mxu0 0.0
        %943 = vmatprep.subr.mxu0 0.0
        %944 = vmatpush1.msra.mxu0 0.0
        %945 = vmatprep.subr.mxu0 0.0
        %946 = vmatpush1.msra.mxu0 0.0
        %947 = vmatprep.subr.mxu0 0.0
        %948 = vmatpush1.msra.mxu0 0.0
        %949 = vmatprep.subr.mxu0 0.0
        %950 = vmatpush1.msra.mxu0 0.0
        %951 = vmatprep.subr.mxu0 0.0
        %952 = vmatpush1.msra.mxu0 0.0
        %953 = vmatprep.subr.mxu0 0.0
        %954 = vmatpush1.msra.mxu0 0.0
        %955 = vmatprep.subr.mxu0 0.0
        %956 = vmatpush1.msra.mxu0 0.0
        %957 = vmatprep.subr.mxu0 0.0
        %958 = vmatpush1.msra.mxu0 0.0
        %959 = vmatprep.subr.mxu0 0.0
        %960 = vmatpush1.msra.mxu0 0.0
        %961 = vmatprep.subr.mxu0 0.0
        %962 = vmatpush1.msra.mxu0 0.0
        %963 = vmatprep.subr.mxu0 0.0
        %964 = vmatpush1.msra.mxu0 0.0
        %965 = vmatprep.subr.mxu0 0.0
        %966 = vmatpush1.msra.mxu0 0.0
        %967 = vmatprep.subr.mxu0 0.0
        %968 = vmatpush1.msra.mxu0 0.0
        %969 = vmatprep.subr.mxu0 0.0
        %970 = vmatpush1.msra.mxu0 0.0
        %971 = vmatprep.subr.mxu0 0.0
        %972 = vmatpush1.msra.mxu0 0.0
        %973 = vmatprep.subr.mxu0 0.0
        %974 = vmatpush1.msra.mxu0 0.0
        %975 = vmatprep.subr.mxu0 0.0
        %976 = vmatpush1.msra.mxu0 0.0
        %977 = vmatprep.subr.mxu0 0.0
        %978 = vmatpush1.msra.mxu0 0.0
        %979 = vmatprep.subr.mxu0 0.0
        %980 = vmatpush1.msra.mxu0 0.0
        %981 = vmatprep.subr.mxu0 0.0
        %982 = vmatpush1.msra.mxu0 0.0
        %983 = vmatprep.subr.mxu0 0.0
        %984 = vmatpush1.msra.mxu0 0.0
        %985 = vmatprep.subr.mxu0 0.0
        %986 = vmatpush1.msra.mxu0 0.0
        %987 = vmatprep.subr.mxu0 0.0
        %988 = vmatpush1.msra.mxu0 0.0
        %989 = vmatprep.subr.mxu0 0.0
        %990 = vmatpush1.msra.mxu0 0.0
        %991 = vmatprep.subr.mxu0 0.0
        %992 = vmatpush1.msra.mxu0 0.0
        %993 = vmatprep.mubr.f32.mxu0 0.0
        %994 = vmatmul.mubr.f32.gmra.mrb[0].mxu0 %v927
        %v995 = vpop.f32.mrb[0].mxu0
        %v996 = vadd.f32 0.0, %v995
        %v997 = vpop.f32.mrb[0].mxu0
        %998 = vdwg.mxu0
        %999 = vst.msk [vmem:[%s407] sm:$0xff] %vm417, %v996
        %p1000 = scmp.lt.s32.totalorder %s26, 2
        %s1001 = scalar_select %p1000, %s26, 2
        %s1002 = smul.addr %s1001, 8
        %s1003 = scalar_lea.vmem %s10, %s1002
        %p1004 = scmp.lt.s32.totalorder %s26, 2
        %s1005 = scalar_select %p1004, %s26, 2
        %s1006 = smul.addr %s1005, 8
        %s1007 = scalar_lea.vmem %s11, %s1006
        // Predicated region
        $region65: #{tpu_custom_call.1} parent=59 // pred_check
          %p1008 = pneg %p259
        $region66: #{tpu_custom_call.1} parent=59 // pred_check_branch
          %1010 = sbr.rel (%p1008) target = $region68
        $region67: #{tpu_custom_call.1} parent=59 // pred_region
          _
        $region68: #{tpu_custom_call.1} parent=59 // pred_fallthru
          _
        // Predicated region
        $region69: #{tpu_custom_call.1} parent=59 // pred_check
          %p1011 = pneg %p285
        $region70: #{tpu_custom_call.1} parent=59 // pred_check_branch
          %1013 = sbr.rel (%p1011) target = $region72
        $region71: #{tpu_custom_call.1} parent=59 // pred_region
          _
        $region72: #{tpu_custom_call.1} parent=59 // pred_fallthru
          _
      $region60: #{tpu_custom_call.1} parent=5 // pred_fallthru
        _
      %p1014 = scmp.le.s32.totalorder 2, %s21
      // Predicated region
      $region73: #{tpu_custom_call.1} parent=5 // pred_check
        %p1015 = pneg %p1014
      $region74: #{tpu_custom_call.1} parent=5 // pred_check_branch
        %1017 = sbr.rel (%p1015) target = $region76
      $region75: #{tpu_custom_call.1} parent=5 // pred_region
        %s1018 = ssub.s32 %s21, 2
        // Predicated region
        $region77: #{tpu_custom_call.1} parent=75 // pred_check
          %p1019 = pneg %p265
        $region78: #{tpu_custom_call.1} parent=75 // pred_check_branch
          %1021 = sbr.rel (%p1019) target = $region80
        $region79: #{tpu_custom_call.1} parent=75 // pred_region
          %p1022 = scmp.lt.s32.totalorder %s27, 2
          %s1023 = scalar_select %p1022, %s27, 2
          %s1024 = smul.addr %s1023, 8
          %s1025 = scalar_lea.vmem %s10, %s1024
        $region80: #{tpu_custom_call.1} parent=75 // pred_fallthru
          _
        // Predicated region
        $region81: #{tpu_custom_call.1} parent=75 // pred_check
          %p1026 = pneg %p291
        $region82: #{tpu_custom_call.1} parent=75 // pred_check_branch
          %1028 = sbr.rel (%p1026) target = $region84
        $region83: #{tpu_custom_call.1} parent=75 // pred_region
          %p1029 = scmp.lt.s32.totalorder %s27, 2
          %s1030 = scalar_select %p1029, %s27, 2
          %s1031 = smul.addr %s1030, 8
          %s1032 = scalar_lea.vmem %s11, %s1031
        $region84: #{tpu_custom_call.1} parent=75 // pred_fallthru
          _
      $region76: #{tpu_custom_call.1} parent=5 // pred_fallthru
        _
    $region6: #{tpu_custom_call.1} parent=1 // loop_footer
      %s25 = sadd.s32 1, %s21
    $region7: #{tpu_custom_call.1} parent=1 // loop_footer_branch
      %20 = sbr.rel target = $region3
    $region8: #{tpu_custom_call.1} parent=1 // loop_exit
      _
    %1033 = vsyncpa [#allocation4], 1
    %s1034 = scalar_lea.sflag [#allocation4], 1
    %1035 = vsyncpa %s1034, 1

</llo_original>
